<compile_context>
chip_gen: v7x
topology: tpu7x:2x2x1
jax: 0.10.0
libtpu: 0.0.40
codegen_flags: <defaults>
</compile_context>

<pallas_src>
import functools

import jax
import jax.numpy as jnp
from jax.experimental import pallas as pl
from jax.experimental.pallas import tpu as pltpu


def _sepconv_kernel(x_ref, wd_ref, wp_ref, b_ref, o_ref, *, stride):
    # x_ref : (S, C_in, TW)    one halo'd window of the phase-decomposed input,
    #                          channels on sublanes, length on lanes.
    # wd_ref: (dm, K, C_in, 1) depthwise weights as per-channel scalars.
    # wp_ref: (dm, C_out, C_in) pointwise weights split by depth-multiplier slot.
    # b_ref : (C_out, 1)       fused bias (depthwise bias folded in).
    # o_ref : (C_out, TL)      lane-dense output tile.
    dm = wd_ref.shape[0]
    K = wd_ref.shape[1]
    TL = o_ref.shape[-1]

    # Load each needed stride-phase of the window exactly once.
    phases = {}

    def phase(p):
        if p not in phases:
            phases[p] = x_ref[p]                      # (C_in, TW)
        return phases[p]

    acc = None
    for m in range(dm):                               # dm is small & static
        # ---- depthwise: K fused VPU MACs, per-channel scalar broadcast over L ----
        dw = None
        for k in range(K):                            # K is small & static
            p, s = k % stride, k // stride
            tap = phase(p)[:, s:s + TL]               # static lane shift (halo)
            term = tap * wd_ref[m, k]                 # (C_in, TL) * (C_in, 1)
            dw = term if dw is None else dw + term    # init from first tap
        # ---- pointwise 1x1 conv on the MXU, output lane-dense (L on lanes) ----
        pm = jnp.dot(wp_ref[m], dw, preferred_element_type=jnp.float32)
        acc = pm if acc is None else acc + pm
    o_ref[...] = (acc + b_ref[...]).astype(o_ref.dtype)


def _choose_l_tile(L_out, C_in, C_out, stride, s_max, itemsize=4):
    """Pick the output-length tile TL and the number of tiles T."""
    if L_out <= 1024:              # whole row fits comfortably in one tile
        return L_out, 1
    # Double-buffered (input window + output tile) budget kept well under
    # v7x's 64 MiB physical VMEM (also fine for v5e/v6e's 128 MiB).
    budget = 12 * 1024 * 1024
    tl = 1024
    while tl > 128:
        win_bytes = stride * C_in * (tl + s_max) * itemsize
        out_bytes = C_out * tl * itemsize
        if 2 * (win_bytes + out_bytes) <= budget:
            break
        tl //= 2
    return tl, pl.cdiv(L_out, tl)


def separable_conv1d(x, w_dw, b_dw, w_pw, b_pw, *, kernel_size, stride,
                     depth_multiplier):
    """x: (N, C_in, L) in PyTorch NCL layout.

    w_dw: (C_in*dm, 1, K)    depthwise Conv1d weight (groups=C_in)
    b_dw: (C_in*dm,)
    w_pw: (C_out, C_in*dm, 1) pointwise Conv1d weight
    b_pw: (C_out,)
    Returns (N, C_out, L_out), matching nn.Conv1d semantics (padding=K//2).
    """
    N, C_in, L = x.shape
    K = kernel_size
    S = stride
    dm = depth_multiplier
    C_out = w_pw.shape[0]
    pad = K // 2
    L_p = L + 2 * pad
    L_out = (L_p - K) // S + 1

    # ---- length tiling (lane-dense tiles, bounded VMEM) ----
    s_max = (K - 1) // S                      # max in-kernel lane shift
    TL, T = _choose_l_tile(L_out, C_in, C_out, S, s_max)
    TW = TL + s_max                           # window length incl. halo

    # ---- glue: one cheap pass (pad + stride-phase decomposition), no K-fold copies ----
    J = T * TL + s_max
    L_need = J * S
    x_pad = jnp.pad(x, ((0, 0), (0, 0), (pad, pad)))
    if L_need > L_p:
        x_pad = jnp.pad(x_pad, ((0, 0), (0, 0), (0, L_need - L_p)))
    elif L_need < L_p:
        x_pad = x_pad[:, :, :L_need]
    # x_ph[n, p, c, j] = x_pad[n, c, j*S + p]; for S == 1 this is just an expand_dims.
    x_ph = x_pad.reshape(N, C_in, J, S).transpose(0, 3, 1, 2)     # (N, S, C_in, J)
    # Overlapping windows with a (K-1)//S halo per L-tile (duplication ~ halo/TL only).
    # TODO(synk): express the halo via an element-indexed BlockSpec to drop this
    # wrapper slice+stack pass entirely.
    x_win = jnp.stack([x_ph[..., t * TL:t * TL + TW] for t in range(T)], axis=1)
    # x_win: (N, T, S, C_in, TW)

    # ---- weights: per-channel depthwise scalars, per-slot pointwise mats, fused bias ----
    # wd_r[m, k, c, 0] = w_dw[c*dm + m, 0, k]
    wd_r = w_dw[:, 0, :].reshape(C_in, dm, K).transpose(1, 2, 0)[..., None]
    # wp_r[m, o, c] = w_pw[o, c*dm + m, 0]
    wp_r = w_pw[:, :, 0].reshape(C_out, C_in, dm).transpose(2, 0, 1)
    # Exact fold of the depthwise bias through the (linear) pointwise conv.
    b_tot = (b_pw + w_pw[:, :, 0] @ b_dw).reshape(C_out, 1)

    kernel = functools.partial(_sepconv_kernel, stride=S)
    out = pl.pallas_call(
        kernel,
        out_shape=jax.ShapeDtypeStruct((N, C_out, L_out), x.dtype),
        grid=(N, T),
        in_specs=[
            pl.BlockSpec((pl.Squeezed(), pl.Squeezed(), S, C_in, TW),
                         lambda n, t: (n, t, 0, 0, 0)),
            pl.BlockSpec((dm, K, C_in, 1), lambda n, t: (0, 0, 0, 0)),
            pl.BlockSpec((dm, C_out, C_in), lambda n, t: (0, 0, 0)),
            pl.BlockSpec((C_out, 1), lambda n, t: (0, 0)),
        ],
        out_specs=pl.BlockSpec((pl.Squeezed(), C_out, TL),
                               lambda n, t: (n, 0, t)),
        compiler_params=pltpu.CompilerParams(
            dimension_semantics=("parallel", "parallel"),
            vmem_limit_bytes=48 * 1024 * 1024),
    )(x_win, wd_r, wp_r, b_tot)
    return out


def _reference(x, w_dw, b_dw, w_pw, b_pw, *, kernel_size, stride,
               depth_multiplier):
    """Pure-JAX reference mirroring torch.nn.Conv1d semantics."""
    pad = kernel_size // 2
    dw = jax.lax.conv_general_dilated(
        x, w_dw, window_strides=(stride,), padding=[(pad, pad)],
        dimension_numbers=("NCH", "OIH", "NCH"),
        feature_group_count=x.shape[1],
    ) + b_dw[None, :, None]
    pw = jax.lax.conv_general_dilated(
        dw, w_pw, window_strides=(1,), padding=[(0, 0)],
        dimension_numbers=("NCH", "OIH", "NCH"),
    ) + b_pw[None, :, None]
    return pw


if __name__ == "__main__":
    # Small deterministic config: batch=2, in_channels=4, length=16,
    # kernel_size=3, stride=1, depth_multiplier=2, out_channels=8.
    N, C_in, L = 2, 4, 16
    kernel_size, stride, depth_multiplier = 3, 1, 2
    C_out = 8
    C_dw = C_in * depth_multiplier

    key = jax.random.PRNGKey(0)
    kx, k1, k2, k3, k4 = jax.random.split(key, 5)
    x = jax.random.normal(kx, (N, C_in, L), dtype=jnp.float32)
    w_dw = jax.random.normal(k1, (C_dw, 1, kernel_size), dtype=jnp.float32) * 0.1
    b_dw = jax.random.normal(k2, (C_dw,), dtype=jnp.float32) * 0.1
    w_pw = jax.random.normal(k3, (C_out, C_dw, 1), dtype=jnp.float32) * 0.1
    b_pw = jax.random.normal(k4, (C_out,), dtype=jnp.float32) * 0.1

    out = separable_conv1d(
        x, w_dw, b_dw, w_pw, b_pw,
        kernel_size=kernel_size, stride=stride,
        depth_multiplier=depth_multiplier)
    out = jax.block_until_ready(out)

    ref = _reference(
        x, w_dw, b_dw, w_pw, b_pw,
        kernel_size=kernel_size, stride=stride,
        depth_multiplier=depth_multiplier)
    assert out.shape == ref.shape, (out.shape, ref.shape)
    err = float(jnp.max(jnp.abs(out - ref)))
    assert err < 1e-4, err
    print("KERNEL_OK")
</pallas_src>

<mosaic_0001>
module attributes {stable_mosaic.version = 11 : i64} {
  func.func @_sepconv_kernel(%arg0: i32, %arg1: i32, %arg2: memref<1x1x1x4x18xf32, #tpu.memory_space<vmem>>, %arg3: memref<2x3x4x1xf32, #tpu.memory_space<vmem>>, %arg4: memref<2x8x4xf32, #tpu.memory_space<vmem>>, %arg5: memref<8x1xf32, #tpu.memory_space<vmem>>, %arg6: memref<1x8x16xf32, #tpu.memory_space<vmem>>) attributes {dimension_semantics = [#tpu.dimension_semantics<parallel>, #tpu.dimension_semantics<parallel>], iteration_bounds = array<i64: 2, 1>, scalar_prefetch = 0 : i64, scratch_operands = 0 : i64, tpu.core_type = #tpu.core_type<tc>, window_params = [{transform_indices = @transform_0, window_bounds = array<i64: 1, 1, 1, 4, 18>}, {pipeline_mode = #tpu.pipeline_mode<synchronous>, transform_indices = @transform_1, window_bounds = array<i64: 2, 3, 4, 1>}, {pipeline_mode = #tpu.pipeline_mode<synchronous>, transform_indices = @transform_2, window_bounds = array<i64: 2, 8, 4>}, {pipeline_mode = #tpu.pipeline_mode<synchronous>, transform_indices = @transform_3, window_bounds = array<i64: 8, 1>}, {transform_indices = @transform_4, window_bounds = array<i64: 1, 8, 16>}]} {
    %c0 = arith.constant 0 : index
    %c0_0 = arith.constant 0 : index
    %c0_1 = arith.constant 0 : index
    %c0_2 = arith.constant 0 : index
    %c0_3 = arith.constant 0 : index
    %0 = vector.load %arg2[%c0, %c0_0, %c0_1, %c0_2, %c0_3] : memref<1x1x1x4x18xf32, #tpu.memory_space<vmem>>, vector<1x1x1x4x18xf32>
    %1 = vector.shape_cast %0 : vector<1x1x1x4x18xf32> to vector<4x18xf32>
    %2 = vector.extract_strided_slice %1 {offsets = [0, 0], sizes = [4, 16], strides = [1, 1]} : vector<4x18xf32> to vector<4x16xf32>
    %c0_4 = arith.constant 0 : index
    %c0_5 = arith.constant 0 : index
    %c0_6 = arith.constant 0 : index
    %c0_7 = arith.constant 0 : index
    %3 = vector.load %arg3[%c0_4, %c0_5, %c0_6, %c0_7] : memref<2x3x4x1xf32, #tpu.memory_space<vmem>>, vector<1x1x4x1xf32>
    %4 = vector.shape_cast %3 : vector<1x1x4x1xf32> to vector<4x1xf32>
    %5 = vector.broadcast %4 : vector<4x1xf32> to vector<4x16xf32>
    %6 = arith.mulf %2, %5 : vector<4x16xf32>
    %7 = vector.extract_strided_slice %1 {offsets = [0, 1], sizes = [4, 16], strides = [1, 1]} : vector<4x18xf32> to vector<4x16xf32>
    %c0_8 = arith.constant 0 : index
    %c1 = arith.constant 1 : index
    %c0_9 = arith.constant 0 : index
    %c0_10 = arith.constant 0 : index
    %8 = vector.load %arg3[%c0_8, %c1, %c0_9, %c0_10] : memref<2x3x4x1xf32, #tpu.memory_space<vmem>>, vector<1x1x4x1xf32>
    %9 = vector.shape_cast %8 : vector<1x1x4x1xf32> to vector<4x1xf32>
    %10 = vector.broadcast %9 : vector<4x1xf32> to vector<4x16xf32>
    %11 = arith.mulf %7, %10 : vector<4x16xf32>
    %12 = arith.addf %6, %11 : vector<4x16xf32>
    %13 = vector.extract_strided_slice %1 {offsets = [0, 2], sizes = [4, 16], strides = [1, 1]} : vector<4x18xf32> to vector<4x16xf32>
    %c0_11 = arith.constant 0 : index
    %c2 = arith.constant 2 : index
    %c0_12 = arith.constant 0 : index
    %c0_13 = arith.constant 0 : index
    %14 = vector.load %arg3[%c0_11, %c2, %c0_12, %c0_13] : memref<2x3x4x1xf32, #tpu.memory_space<vmem>>, vector<1x1x4x1xf32>
    %15 = vector.shape_cast %14 : vector<1x1x4x1xf32> to vector<4x1xf32>
    %16 = vector.broadcast %15 : vector<4x1xf32> to vector<4x16xf32>
    %17 = arith.mulf %13, %16 : vector<4x16xf32>
    %18 = arith.addf %12, %17 : vector<4x16xf32>
    %c0_14 = arith.constant 0 : index
    %c0_15 = arith.constant 0 : index
    %c0_16 = arith.constant 0 : index
    %19 = vector.load %arg4[%c0_14, %c0_15, %c0_16] : memref<2x8x4xf32, #tpu.memory_space<vmem>>, vector<1x8x4xf32>
    %20 = vector.shape_cast %19 : vector<1x8x4xf32> to vector<8x4xf32>
    %cst = arith.constant dense<0.000000e+00> : vector<8x16xf32>
    %21 = tpu.matmul %20, %18, %cst {dimension_numbers = #tpu.dot_dimension_numbers<[1], [0], [0], [1], [0, 0, 1, 1], [], []>} : vector<8x4xf32>, vector<4x16xf32>, vector<8x16xf32> -> vector<8x16xf32>
    %22 = vector.extract_strided_slice %1 {offsets = [0, 0], sizes = [4, 16], strides = [1, 1]} : vector<4x18xf32> to vector<4x16xf32>
    %c1_17 = arith.constant 1 : index
    %c0_18 = arith.constant 0 : index
    %c0_19 = arith.constant 0 : index
    %c0_20 = arith.constant 0 : index
    %23 = vector.load %arg3[%c1_17, %c0_18, %c0_19, %c0_20] : memref<2x3x4x1xf32, #tpu.memory_space<vmem>>, vector<1x1x4x1xf32>
    %24 = vector.shape_cast %23 : vector<1x1x4x1xf32> to vector<4x1xf32>
    %25 = vector.broadcast %24 : vector<4x1xf32> to vector<4x16xf32>
    %26 = arith.mulf %22, %25 : vector<4x16xf32>
    %27 = vector.extract_strided_slice %1 {offsets = [0, 1], sizes = [4, 16], strides = [1, 1]} : vector<4x18xf32> to vector<4x16xf32>
    %c1_21 = arith.constant 1 : index
    %c1_22 = arith.constant 1 : index
    %c0_23 = arith.constant 0 : index
    %c0_24 = arith.constant 0 : index
    %28 = vector.load %arg3[%c1_21, %c1_22, %c0_23, %c0_24] : memref<2x3x4x1xf32, #tpu.memory_space<vmem>>, vector<1x1x4x1xf32>
    %29 = vector.shape_cast %28 : vector<1x1x4x1xf32> to vector<4x1xf32>
    %30 = vector.broadcast %29 : vector<4x1xf32> to vector<4x16xf32>
    %31 = arith.mulf %27, %30 : vector<4x16xf32>
    %32 = arith.addf %26, %31 : vector<4x16xf32>
    %33 = vector.extract_strided_slice %1 {offsets = [0, 2], sizes = [4, 16], strides = [1, 1]} : vector<4x18xf32> to vector<4x16xf32>
    %c1_25 = arith.constant 1 : index
    %c2_26 = arith.constant 2 : index
    %c0_27 = arith.constant 0 : index
    %c0_28 = arith.constant 0 : index
    %34 = vector.load %arg3[%c1_25, %c2_26, %c0_27, %c0_28] : memref<2x3x4x1xf32, #tpu.memory_space<vmem>>, vector<1x1x4x1xf32>
    %35 = vector.shape_cast %34 : vector<1x1x4x1xf32> to vector<4x1xf32>
    %36 = vector.broadcast %35 : vector<4x1xf32> to vector<4x16xf32>
    %37 = arith.mulf %33, %36 : vector<4x16xf32>
    %38 = arith.addf %32, %37 : vector<4x16xf32>
    %c1_29 = arith.constant 1 : index
    %c0_30 = arith.constant 0 : index
    %c0_31 = arith.constant 0 : index
    %39 = vector.load %arg4[%c1_29, %c0_30, %c0_31] : memref<2x8x4xf32, #tpu.memory_space<vmem>>, vector<1x8x4xf32>
    %40 = vector.shape_cast %39 : vector<1x8x4xf32> to vector<8x4xf32>
    %cst_32 = arith.constant dense<0.000000e+00> : vector<8x16xf32>
    %41 = tpu.matmul %40, %38, %cst_32 {dimension_numbers = #tpu.dot_dimension_numbers<[1], [0], [0], [1], [0, 0, 1, 1], [], []>} : vector<8x4xf32>, vector<4x16xf32>, vector<8x16xf32> -> vector<8x16xf32>
    %42 = arith.addf %21, %41 : vector<8x16xf32>
    %c0_33 = arith.constant 0 : index
    %c0_34 = arith.constant 0 : index
    %43 = vector.load %arg5[%c0_33, %c0_34] : memref<8x1xf32, #tpu.memory_space<vmem>>, vector<8x1xf32>
    %44 = vector.broadcast %43 : vector<8x1xf32> to vector<8x16xf32>
    %45 = arith.addf %42, %44 : vector<8x16xf32>
    %c0_35 = arith.constant 0 : index
    %c0_36 = arith.constant 0 : index
    %c0_37 = arith.constant 0 : index
    %46 = vector.load %arg6[%c0_35, %c0_36, %c0_37] : memref<1x8x16xf32, #tpu.memory_space<vmem>>, vector<1x8x16xf32>
    %47 = vector.shape_cast %46 : vector<1x8x16xf32> to vector<8x16xf32>
    %48 = vector.shape_cast %45 : vector<8x16xf32> to vector<1x8x16xf32>
    tpu.vector_store %arg6[%c0_35, %c0_36, %c0_37], %48 {strides = array<i32>} : memref<1x8x16xf32, #tpu.memory_space<vmem>>, vector<1x8x16xf32>,
    return
  }
  func.func @transform_0(%arg0: i32, %arg1: i32) -> (i32, i32, i32, i32, i32) {
    %c0_i32 = arith.constant 0 : i32
    %c0_i32_0 = arith.constant 0 : i32
    %c0_i32_1 = arith.constant 0 : i32
    %c0_i32_2 = arith.constant 0 : i32
    return %arg0, %arg1, %c0_i32, %c0_i32_0, %c0_i32_1 : i32, i32, i32, i32, i32
  }
  func.func @transform_1(%arg0: i32, %arg1: i32) -> (i32, i32, i32, i32) {
    %c0_i32 = arith.constant 0 : i32
    %c0_i32_0 = arith.constant 0 : i32
    %c0_i32_1 = arith.constant 0 : i32
    %c0_i32_2 = arith.constant 0 : i32
    %c0_i32_3 = arith.constant 0 : i32
    return %c0_i32, %c0_i32_0, %c0_i32_1, %c0_i32_2 : i32, i32, i32, i32
  }
  func.func @transform_2(%arg0: i32, %arg1: i32) -> (i32, i32, i32) {
    %c0_i32 = arith.constant 0 : i32
    %c0_i32_0 = arith.constant 0 : i32
    %c0_i32_1 = arith.constant 0 : i32
    %c0_i32_2 = arith.constant 0 : i32
    return %c0_i32, %c0_i32_0, %c0_i32_1 : i32, i32, i32
  }
  func.func @transform_3(%arg0: i32, %arg1: i32) -> (i32, i32) {
    %c0_i32 = arith.constant 0 : i32
    %c0_i32_0 = arith.constant 0 : i32
    %c0_i32_1 = arith.constant 0 : i32
    return %c0_i32, %c0_i32_0 : i32, i32
  }
  func.func @transform_4(%arg0: i32, %arg1: i32) -> (i32, i32, i32) {
    %c0_i32 = arith.constant 0 : i32
    %c0_i32_0 = arith.constant 0 : i32
    return %arg0, %c0_i32, %arg1 : i32, i32, i32
  }
}

</mosaic_0001>

<llo_original>
// kernel: tpu_custom_call.1
$region0: #{tpu_custom_call.1}
  #allocation0 [shape = 'u32[]', space=smem, size = 0x4, offset = 0x4, fixed_abs, tag = 'smem constant byte address 0x4 - core index']
  #allocation1 [shape = 'u32[144,128]{1,0:T(1,128)}', space=vmem, size = 0x12000, scoped, tag = 'internal scratch']
  %s0 = inlined_call_operand.vmem [shape: f32[2,1,1,4,18], index: 0, kind: input, shape index: {}]
  %s1 = inlined_call_operand.vmem [shape: f32[2,3,4,1], index: 1, kind: input, shape index: {}]
  %s2 = inlined_call_operand.vmem [shape: f32[2,8,4], index: 2, kind: input, shape index: {}]
  %s3 = inlined_call_operand.vmem [shape: f32[8,1], index: 3, kind: input, shape index: {}]
  %s4 = inlined_call_operand.hbm [shape: f32[2,8,16], index: 4, kind: output, shape index: {}]
  %s5 = sld [smem:[#allocation0]]
  $region49: #{tpu_custom_call.1} parent=0
    _
  %s7 = ssub.s32 1, %s5
  %s8 = scalar_select 0, %s7, %s5
  $region1: #{tpu_custom_call.1} parent=0
    #allocation2 [shape = 'u8[8192]{0}', space=vmem, size = 0x2000, scoped, tag = 'output window, operand 0']
    #allocation3 [shape = 's32[2]{0}', space=sflag, size = 0x8, scoped, tag = 'scoped memory for tpu_custom_call.1']
    %9 = vsyncpa [#allocation3], 0
    %s10 = scalar_lea.sflag [#allocation3], 1
    %11 = vsyncpa %s10, 0
    loop: start=0, step=1, limit=4
    $region2: #{tpu_custom_call.1} parent=1 // loop_pre_header
      _
    $region3: #{tpu_custom_call.1} parent=1 // loop_header
      %s13 = sphi 0, %s17
      %p14 = scmp.ge.s32.totalorder %s13, 4
      %s20 = sphi 0, %s32
      %s21 = sphi 0, %s28
      %s22 = sphi 0, %s20
      %s23 = sphi 0, %s21
      %s24 = sphi 0, %s22
      %s25 = sphi 0, %s23
      %s37 = sphi 0, %s39
      %s40 = sphi 0, %s37
      %s41 = sphi 0, %s40
      %s57 = sphi 0, %s41
      %s61 = sphi 0, %s61
      %s63 = sphi 0, %s61
      %s64 = sphi 0, %s63
      %s78 = sphi 0, %s64
      %s82 = sphi 0, %s82
      %s84 = sphi 0, %s82
      %s85 = sphi 0, %s84
      %s99 = sphi 0, %s85
      %s103 = sphi 0, %s103
      %s105 = sphi 0, %s103
      %s106 = sphi 0, %s105
      %s120 = sphi 0, %s106
      %s128 = sphi 0, %s130
      %s131 = sphi 0, %s128
      %s132 = sphi 0, %s131
      %s148 = sphi 0, %s132
    $region4: #{tpu_custom_call.1} parent=1 // loop_header_branch
      %16 = sbr.rel (%p14) target = $region8
    $region5: #{tpu_custom_call.1} parent=1 // loop_body
      %s18 = ssub.s32 %s13, 1
      %s19 = ssub.s32 %s13, 2
      %s26 = sadd.s32 1, %s21
      %p27 = scmp.ge.s32.totalorder %s26, 1
      %s28 = scalar_select %p27, 0, %s26
      %s29 = sadd.s32 1, %s20
      %s30 = scalar_select %p27, %s29, %s20
      %p31 = scmp.ge.s32.totalorder %s30, 2
      %s32 = scalar_select %p31, 0, %s30
      %s33 = ssub.s32 %s20, %s32
      %s34 = ssub.s32 %s21, %s28
      %s35 = sor.u32 %s33, %s34
      %p36 = scmp.eq.s32.totalorder %s35, 0
      %s38 = sadd.s32 %s37, 1
      %s39 = scalar_select %p36, %s37, %s38
      %p42 = pneg %p36
      %p43 = scmp.eq.s32.totalorder %s13, 1
      %p44 = por %p42, %p43
      %p45 = scmp.ne.s32.totalorder %s37, %s40
      %p46 = scmp.eq.s32.totalorder %s13, 0
      %p47 = por %p45, %p46
      %p48 = scmp.ne.s32.totalorder %s37, %s40
      %p49 = scmp.eq.s32.totalorder %s18, 1
      %p50 = por %p48, %p49
      %p51 = scmp.ne.s32.totalorder %s40, %s41
      %p52 = scmp.eq.s32.totalorder %s18, 0
      %p53 = por %p51, %p52
      %p54 = scmp.ne.s32.totalorder %s40, %s41
      %p55 = scmp.eq.s32.totalorder %s19, 1
      %p56 = por %p54, %p55
      %p58 = scmp.ne.s32.totalorder %s41, %s57
      %p59 = scmp.eq.s32.totalorder %s19, 0
      %p60 = por %p58, %p59
      %s62 = sadd.s32 %s61, 1
      %p65 = scmp.eq.s32.totalorder %s13, 1
      %p66 = scmp.ne.s32.totalorder %s61, %s63
      %p67 = scmp.eq.s32.totalorder %s13, 0
      %p68 = por %p66, %p67
      %p69 = scmp.ne.s32.totalorder %s61, %s63
      %p70 = scmp.eq.s32.totalorder %s18, 1
      %p71 = por %p69, %p70
      %p72 = scmp.ne.s32.totalorder %s63, %s64
      %p73 = scmp.eq.s32.totalorder %s18, 0
      %p74 = por %p72, %p73
      %p75 = scmp.ne.s32.totalorder %s63, %s64
      %p76 = scmp.eq.s32.totalorder %s19, 1
      %p77 = por %p75, %p76
      %p79 = scmp.ne.s32.totalorder %s64, %s78
      %p80 = scmp.eq.s32.totalorder %s19, 0
      %p81 = por %p79, %p80
      %s83 = sadd.s32 %s82, 1
      %p86 = scmp.eq.s32.totalorder %s13, 1
      %p87 = scmp.ne.s32.totalorder %s82, %s84
      %p88 = scmp.eq.s32.totalorder %s13, 0
      %p89 = por %p87, %p88
      %p90 = scmp.ne.s32.totalorder %s82, %s84
      %p91 = scmp.eq.s32.totalorder %s18, 1
      %p92 = por %p90, %p91
      %p93 = scmp.ne.s32.totalorder %s84, %s85
      %p94 = scmp.eq.s32.totalorder %s18, 0
      %p95 = por %p93, %p94
      %p96 = scmp.ne.s32.totalorder %s84, %s85
      %p97 = scmp.eq.s32.totalorder %s19, 1
      %p98 = por %p96, %p97
      %p100 = scmp.ne.s32.totalorder %s85, %s99
      %p101 = scmp.eq.s32.totalorder %s19, 0
      %p102 = por %p100, %p101
      %s104 = sadd.s32 %s103, 1
      %p107 = scmp.eq.s32.totalorder %s13, 1
      %p108 = scmp.ne.s32.totalorder %s103, %s105
      %p109 = scmp.eq.s32.totalorder %s13, 0
      %p110 = por %p108, %p109
      %p111 = scmp.ne.s32.totalorder %s103, %s105
      %p112 = scmp.eq.s32.totalorder %s18, 1
      %p113 = por %p111, %p112
      %p114 = scmp.ne.s32.totalorder %s105, %s106
      %p115 = scmp.eq.s32.totalorder %s18, 0
      %p116 = por %p114, %p115
      %p117 = scmp.ne.s32.totalorder %s105, %s106
      %p118 = scmp.eq.s32.totalorder %s19, 1
      %p119 = por %p117, %p118
      %p121 = scmp.ne.s32.totalorder %s106, %s120
      %p122 = scmp.eq.s32.totalorder %s19, 0
      %p123 = por %p121, %p122
      %s124 = ssub.s32 %s20, %s32
      %s125 = ssub.s32 %s21, %s28
      %s126 = sor.u32 %s124, %s125
      %p127 = scmp.eq.s32.totalorder %s126, 0
      %s129 = sadd.s32 %s128, 1
      %s130 = scalar_select %p127, %s128, %s129
      %p133 = pneg %p127
      %p134 = scmp.eq.s32.totalorder %s13, 1
      %p135 = por %p133, %p134
      %p136 = scmp.ne.s32.totalorder %s128, %s131
      %p137 = scmp.eq.s32.totalorder %s13, 0
      %p138 = por %p136, %p137
      %p139 = scmp.ne.s32.totalorder %s128, %s131
      %p140 = scmp.eq.s32.totalorder %s18, 1
      %p141 = por %p139, %p140
      %p142 = scmp.ne.s32.totalorder %s131, %s132
      %p143 = scmp.eq.s32.totalorder %s18, 0
      %p144 = por %p142, %p143
      %p145 = scmp.ne.s32.totalorder %s131, %s132
      %p146 = scmp.eq.s32.totalorder %s19, 1
      %p147 = por %p145, %p146
      %p149 = scmp.ne.s32.totalorder %s132, %s148
      %p150 = scmp.eq.s32.totalorder %s19, 0
      %p151 = por %p149, %p150
      %p152 = scmp.le.s32.totalorder 1, %s13
      %p153 = scmp.lt.s32.totalorder %s13, 3
      %p154 = pnand %p152, %p153
      %p155 = pneg %p154
      // Predicated region
      $region9: #{tpu_custom_call.1} parent=5 // pred_check
        _
      $region10: #{tpu_custom_call.1} parent=5 // pred_check_branch
        %157 = sbr.rel (%p154) target = $region12
      $region11: #{tpu_custom_call.1} parent=5 // pred_region
        %s158 = ssub.s32 %s13, 1
        // Predicated region
        $region13: #{tpu_custom_call.1} parent=11 // pred_check
          %p159 = pneg %p74
        $region14: #{tpu_custom_call.1} parent=11 // pred_check_branch
          %161 = sbr.rel (%p159) target = $region16
        $region15: #{tpu_custom_call.1} parent=11 // pred_region
          _
        $region16: #{tpu_custom_call.1} parent=11 // pred_fallthru
          _
        // Predicated region
        $region17: #{tpu_custom_call.1} parent=11 // pred_check
          %p162 = pneg %p95
        $region18: #{tpu_custom_call.1} parent=11 // pred_check_branch
          %164 = sbr.rel (%p162) target = $region20
        $region19: #{tpu_custom_call.1} parent=11 // pred_region
          _
        $region20: #{tpu_custom_call.1} parent=11 // pred_fallthru
          _
        // Predicated region
        $region21: #{tpu_custom_call.1} parent=11 // pred_check
          %p165 = pneg %p116
        $region22: #{tpu_custom_call.1} parent=11 // pred_check_branch
          %167 = sbr.rel (%p165) target = $region24
        $region23: #{tpu_custom_call.1} parent=11 // pred_region
          _
        $region24: #{tpu_custom_call.1} parent=11 // pred_fallthru
          _
      $region12: #{tpu_custom_call.1} parent=5 // pred_fallthru
        _
      %p168 = scmp.lt.s32.totalorder %s13, 2
      // Predicated region
      $region25: #{tpu_custom_call.1} parent=5 // pred_check
        %p169 = pneg %p168
      $region26: #{tpu_custom_call.1} parent=5 // pred_check_branch
        %171 = sbr.rel (%p169) target = $region28
      $region27: #{tpu_custom_call.1} parent=5 // pred_region
        // Predicated region
        $region29: #{tpu_custom_call.1} parent=27 // pred_check
          %p172 = pneg %p47
        $region30: #{tpu_custom_call.1} parent=27 // pred_check_branch
          %174 = sbr.rel (%p172) target = $region32
        $region31: #{tpu_custom_call.1} parent=27 // pred_region
          %p175 = scmp.lt.s32.totalorder %s20, 1
          %s176 = scalar_select %p175, %s20, 1
          %p177 = scmp.lt.s32.totalorder %s21, 0
          %s178 = scalar_select %p177, %s21, 0
          %s179 = sadd.s32 %s178, %s176
          %s180 = smul.addr %s179, 4
          %s181 = scalar_lea.vmem %s0, %s180
        $region32: #{tpu_custom_call.1} parent=27 // pred_fallthru
          _
      $region28: #{tpu_custom_call.1} parent=5 // pred_fallthru
        _
      %p182 = scmp.le.s32.totalorder 1, %s13
      %p183 = scmp.lt.s32.totalorder %s13, 3
      %p184 = pnand %p182, %p183
      %p185 = pneg %p184
      // Predicated region
      $region33: #{tpu_custom_call.1} parent=5 // pred_check
        _
      $region34: #{tpu_custom_call.1} parent=5 // pred_check_branch
        %187 = sbr.rel (%p184) target = $region36
      $region35: #{tpu_custom_call.1} parent=5 // pred_region
        %s188 = ssub.s32 %s13, 1
        %p189 = scmp.lt.s32.totalorder %s22, 1
        %s190 = scalar_select %p189, %s22, 1
        %p191 = scmp.lt.s32.totalorder %s23, 0
        %s192 = scalar_select %p191, %s23, 0
        %s193 = sadd.s32 %s192, %s190
        %s194 = smul.addr %s193, 4
        %s195 = scalar_lea.vmem %s0, %s194
        %p196 = pneg %p53
        %p197 = pneg %p50
        %p198 = pneg %p74
        %p199 = pneg %p71
        %p200 = pneg %p95
        %p201 = pneg %p92
        %p202 = pneg %p116
        %p203 = pneg %p113
        %p204 = pneg %p144
        %p205 = pneg %p141
        %s206 = sand.u32 %s131, 1
        %s207 = scalar_lea.sflag [#allocation3], %s206
        %s208 = sand.u32 %s131, 1
        %s209 = smul.addr %s208, 8
        %s210 = scalar_lea.vmem [#allocation2], %s209
        %p211 = scmp.lt.s32.totalorder %s22, 1
        %s212 = scalar_select %p211, %s22, 1
        %p213 = scmp.lt.s32.totalorder %s23, 0
        %s214 = scalar_select %p213, %s23, 0
        %s215 = sadd.s32 %s214, %s212
        %s216 = smul.addr %s215, 4
        %s217 = scalar_lea.vmem %s0, %s216
        %v218 = vld [vmem:[%s217] sm:$0xf]
        %v219 = vld [vmem:[%s1] sm:$0xf]
        %221 = vset.pattern.permute.xlu0 0
        %222 = vperm.xlu0 %221, %v219
        %v223 = vpop.permute.xlu0 %222
        %v225 = vmul.f32 %v218, %v223
        %s226 = scalar_lea.vmem %s1, 4
        %v227 = vld [vmem:[%s226] sm:$0xf]
        %229 = vset.pattern.permute.xlu0 0
        %230 = vperm.xlu0 %229, %v227
        %v231 = vpop.permute.xlu0 %230
        %v233 = vmul.f32 %v218, %v231
        %235 = vrot.lane.b32.xlu0 %v233, 127
        %v236 = vpop.permute.xlu0 %235
        %v238 = vadd.f32 %v225, %v236
        %s239 = scalar_lea.vmem %s1, 8
        %v240 = vld [vmem:[%s239] sm:$0xf]
        %242 = vset.pattern.permute.xlu0 0
        %243 = vperm.xlu0 %242, %v240
        %v244 = vpop.permute.xlu0 %243
        %v246 = vmul.f32 %v218, %v244
        %248 = vrot.lane.b32.xlu0 %v246, 126
        %v249 = vpop.permute.xlu0 %248
        %v251 = vadd.f32 %v238, %v249
        %v252 = vld [vmem:[%s2] sm:$0xff]
        %s253 = scalar_lea.vmem %s1, 12
        %v254 = vld [vmem:[%s253] sm:$0xf]
        %256 = vset.pattern.permute.xlu0 0
        %257 = vperm.xlu0 %256, %v254
        %v258 = vpop.permute.xlu0 %257
        %v260 = vmul.f32 %v218, %v258
        %s261 = scalar_lea.vmem %s1, 16
        %v262 = vld [vmem:[%s261] sm:$0xf]
        %264 = vset.pattern.permute.xlu0 0
        %265 = vperm.xlu0 %264, %v262
        %v266 = vpop.permute.xlu0 %265
        %v268 = vmul.f32 %v218, %v266
        %270 = vrot.lane.b32.xlu0 %v268, 127
        %v271 = vpop.permute.xlu0 %270
        %v273 = vadd.f32 %v260, %v271
        %s274 = scalar_lea.vmem %s1, 20
        %v275 = vld [vmem:[%s274] sm:$0xf]
        %277 = vset.pattern.permute.xlu0 0
        %278 = vperm.xlu0 %277, %v275
        %v279 = vpop.permute.xlu0 %278
        %v281 = vmul.f32 %v218, %v279
        %283 = vrot.lane.b32.xlu0 %v281, 126
        %v284 = vpop.permute.xlu0 %283
        %v286 = vadd.f32 %v273, %v284
        %s287 = scalar_lea.vmem %s2, 8
        %v288 = vld [vmem:[%s287] sm:$0xff]
        %vm289 = vcmask 31744
        %v291 = vsel %vm289, %v288, 0
        %vm293 = vcmask 1043456
        %v295 = vsel %vm293, %v286, 0
        %297 = vmatprep.subr.mxu0 0.0
        %298 = vmatpush1.msra.mxu0 %v295
        %299 = vmatprep.subr.mxu0 0.0
        %300 = vmatpush1.msra.mxu0 0.0
        %301 = vmatprep.subr.mxu0 0.0
        %302 = vmatpush1.msra.mxu0 0.0
        %303 = vmatprep.subr.mxu0 0.0
        %304 = vmatpush1.msra.mxu0 0.0
        %305 = vmatprep.subr.mxu0 0.0
        %306 = vmatpush1.msra.mxu0 0.0
        %307 = vmatprep.subr.mxu0 0.0
        %308 = vmatpush1.msra.mxu0 0.0
        %309 = vmatprep.subr.mxu0 0.0
        %310 = vmatpush1.msra.mxu0 0.0
        %311 = vmatprep.subr.mxu0 0.0
        %312 = vmatpush1.msra.mxu0 0.0
        %313 = vmatprep.subr.mxu0 0.0
        %314 = vmatpush1.msra.mxu0 0.0
        %315 = vmatprep.subr.mxu0 0.0
        %316 = vmatpush1.msra.mxu0 0.0
        %317 = vmatprep.subr.mxu0 0.0
        %318 = vmatpush1.msra.mxu0 0.0
        %319 = vmatprep.subr.mxu0 0.0
        %320 = vmatpush1.msra.mxu0 0.0
        %321 = vmatprep.subr.mxu0 0.0
        %322 = vmatpush1.msra.mxu0 0.0
        %323 = vmatprep.subr.mxu0 0.0
        %324 = vmatpush1.msra.mxu0 0.0
        %325 = vmatprep.subr.mxu0 0.0
        %326 = vmatpush1.msra.mxu0 0.0
        %327 = vmatprep.subr.mxu0 0.0
        %328 = vmatpush1.msra.mxu0 0.0
        %329 = vmatprep.subr.mxu0 0.0
        %330 = vmatpush1.msra.mxu0 0.0
        %331 = vmatprep.subr.mxu0 0.0
        %332 = vmatpush1.msra.mxu0 0.0
        %333 = vmatprep.subr.mxu0 0.0
        %334 = vmatpush1.msra.mxu0 0.0
        %335 = vmatprep.subr.mxu0 0.0
        %336 = vmatpush1.msra.mxu0 0.0
        %337 = vmatprep.subr.mxu0 0.0
        %338 = vmatpush1.msra.mxu0 0.0
        %339 = vmatprep.subr.mxu0 0.0
        %340 = vmatpush1.msra.mxu0 0.0
        %341 = vmatprep.subr.mxu0 0.0
        %342 = vmatpush1.msra.mxu0 0.0
        %343 = vmatprep.subr.mxu0 0.0
        %344 = vmatpush1.msra.mxu0 0.0
        %345 = vmatprep.subr.mxu0 0.0
        %346 = vmatpush1.msra.mxu0 0.0
        %347 = vmatprep.subr.mxu0 0.0
        %348 = vmatpush1.msra.mxu0 0.0
        %349 = vmatprep.subr.mxu0 0.0
        %350 = vmatpush1.msra.mxu0 0.0
        %351 = vmatprep.subr.mxu0 0.0
        %352 = vmatpush1.msra.mxu0 0.0
        %353 = vmatprep.subr.mxu0 0.0
        %354 = vmatpush1.msra.mxu0 0.0
        %355 = vmatprep.subr.mxu0 0.0
        %356 = vmatpush1.msra.mxu0 0.0
        %357 = vmatprep.subr.mxu0 0.0
        %358 = vmatpush1.msra.mxu0 0.0
        %359 = vmatprep.subr.mxu0 0.0
        %360 = vmatpush1.msra.mxu0 0.0
        %361 = vmatprep.mubr.f32.mxu0 0.0
        %362 = vmatmul.mubr.f32.gmra.mrb[0].mxu0 %v291
        %v363 = vpop.f32.mrb[0].mxu0
        %v364 = vadd.f32 0.0, %v363
        %v365 = vpop.f32.mrb[0].mxu0
        %366 = vdwg.mxu0
        %v368 = vsel %vm289, %v252, 0
        %v371 = vsel %vm293, %v251, 0
        %373 = vmatprep.subr.mxu0 0.0
        %374 = vmatpush1.msra.mxu0 %v371
        %375 = vmatprep.subr.mxu0 0.0
        %376 = vmatpush1.msra.mxu0 0.0
        %377 = vmatprep.subr.mxu0 0.0
        %378 = vmatpush1.msra.mxu0 0.0
        %379 = vmatprep.subr.mxu0 0.0
        %380 = vmatpush1.msra.mxu0 0.0
        %381 = vmatprep.subr.mxu0 0.0
        %382 = vmatpush1.msra.mxu0 0.0
        %383 = vmatprep.subr.mxu0 0.0
        %384 = vmatpush1.msra.mxu0 0.0
        %385 = vmatprep.subr.mxu0 0.0
        %386 = vmatpush1.msra.mxu0 0.0
        %387 = vmatprep.subr.mxu0 0.0
        %388 = vmatpush1.msra.mxu0 0.0
        %389 = vmatprep.subr.mxu0 0.0
        %390 = vmatpush1.msra.mxu0 0.0
        %391 = vmatprep.subr.mxu0 0.0
        %392 = vmatpush1.msra.mxu0 0.0
        %393 = vmatprep.subr.mxu0 0.0
        %394 = vmatpush1.msra.mxu0 0.0
        %395 = vmatprep.subr.mxu0 0.0
        %396 = vmatpush1.msra.mxu0 0.0
        %397 = vmatprep.subr.mxu0 0.0
        %398 = vmatpush1.msra.mxu0 0.0
        %399 = vmatprep.subr.mxu0 0.0
        %400 = vmatpush1.msra.mxu0 0.0
        %401 = vmatprep.subr.mxu0 0.0
        %402 = vmatpush1.msra.mxu0 0.0
        %403 = vmatprep.subr.mxu0 0.0
        %404 = vmatpush1.msra.mxu0 0.0
        %405 = vmatprep.subr.mxu0 0.0
        %406 = vmatpush1.msra.mxu0 0.0
        %407 = vmatprep.subr.mxu0 0.0
        %408 = vmatpush1.msra.mxu0 0.0
        %409 = vmatprep.subr.mxu0 0.0
        %410 = vmatpush1.msra.mxu0 0.0
        %411 = vmatprep.subr.mxu0 0.0
        %412 = vmatpush1.msra.mxu0 0.0
        %413 = vmatprep.subr.mxu0 0.0
        %414 = vmatpush1.msra.mxu0 0.0
        %415 = vmatprep.subr.mxu0 0.0
        %416 = vmatpush1.msra.mxu0 0.0
        %417 = vmatprep.subr.mxu0 0.0
        %418 = vmatpush1.msra.mxu0 0.0
        %419 = vmatprep.subr.mxu0 0.0
        %420 = vmatpush1.msra.mxu0 0.0
        %421 = vmatprep.subr.mxu0 0.0
        %422 = vmatpush1.msra.mxu0 0.0
        %423 = vmatprep.subr.mxu0 0.0
        %424 = vmatpush1.msra.mxu0 0.0
        %425 = vmatprep.subr.mxu0 0.0
        %426 = vmatpush1.msra.mxu0 0.0
        %427 = vmatprep.subr.mxu0 0.0
        %428 = vmatpush1.msra.mxu0 0.0
        %429 = vmatprep.subr.mxu0 0.0
        %430 = vmatpush1.msra.mxu0 0.0
        %431 = vmatprep.subr.mxu0 0.0
        %432 = vmatpush1.msra.mxu0 0.0
        %433 = vmatprep.subr.mxu0 0.0
        %434 = vmatpush1.msra.mxu0 0.0
        %435 = vmatprep.subr.mxu0 0.0
        %436 = vmatpush1.msra.mxu0 0.0
        %437 = vmatprep.mubr.f32.mxu0 0.0
        %438 = vmatmul.mubr.f32.gmra.mrb[0].mxu0 %v368
        %v439 = vpop.f32.mrb[0].mxu0
        %v440 = vadd.f32 %v364, %v439
        %v441 = vpop.f32.mrb[0].mxu0
        %442 = vdwg.mxu0
        %v443 = vld [vmem:[%s3] sm:$0xff]
        %445 = vset.pattern.permute.xlu0 0
        %446 = vperm.xlu0 %445, %v443
        %v447 = vpop.permute.xlu0 %446
        %v449 = vadd.f32 %v440, %v447
        %vm450 = vcmask 130048
        %451 = vst.msk [vmem:[%s210] sm:$0xff] %vm450, %v449
        %s452 = sand.u32 %s131, 1
        %s453 = scalar_lea.sflag [#allocation3], %s452
        %s454 = sand.u32 %s131, 1
        %s455 = smul.addr %s454, 8
        %s456 = scalar_lea.vmem [#allocation2], %s455
        // Predicated region
        $region37: #{tpu_custom_call.1} parent=35 // pred_check
          %p457 = pneg %p141
        $region38: #{tpu_custom_call.1} parent=35 // pred_check_branch
          %459 = sbr.rel (%p457) target = $region40
        $region39: #{tpu_custom_call.1} parent=35 // pred_region
          %s461 = ssub.s32 128, 128
          %462 = vsyncadd %s453, %s461
          %s463 = sadd.s32 %s23, %s22
          %s464 = smul.addr %s463, 128
          %s465 = scalar_lea.hbm %s4, %s464
          %s467 = sshll.u32 %s456, 4
          %s468 = int_to_ptr.vmem [resolvable:$true] %s467
          %470 = dma.vmem_to_hbm [thread:$0]  %s468, 128, %s465, %s453
        $region40: #{tpu_custom_call.1} parent=35 // pred_fallthru
          _
      $region36: #{tpu_custom_call.1} parent=5 // pred_fallthru
        _
      %p471 = scmp.le.s32.totalorder 2, %s13
      // Predicated region
      $region41: #{tpu_custom_call.1} parent=5 // pred_check
        %p472 = pneg %p471
      $region42: #{tpu_custom_call.1} parent=5 // pred_check_branch
        %474 = sbr.rel (%p472) target = $region44
      $region43: #{tpu_custom_call.1} parent=5 // pred_region
        %s475 = ssub.s32 %s13, 2
        // Predicated region
        $region45: #{tpu_custom_call.1} parent=43 // pred_check
          %p476 = pneg %p147
        $region46: #{tpu_custom_call.1} parent=43 // pred_check_branch
          %478 = sbr.rel (%p476) target = $region48
        $region47: #{tpu_custom_call.1} parent=43 // pred_region
          %s479 = sand.u32 %s132, 1
          %s480 = scalar_lea.sflag [#allocation3], %s479
          %s481 = sand.u32 %s132, 1
          %s482 = smul.addr %s481, 8
          %s483 = scalar_lea.vmem [#allocation2], %s482
          %484 = dma.done %s480, 128
        $region48: #{tpu_custom_call.1} parent=43 // pred_fallthru
          _
      $region44: #{tpu_custom_call.1} parent=5 // pred_fallthru
        _
    $region6: #{tpu_custom_call.1} parent=1 // loop_footer
      %s17 = sadd.s32 1, %s13
    $region7: #{tpu_custom_call.1} parent=1 // loop_footer_branch
      %12 = sbr.rel target = $region3
    $region8: #{tpu_custom_call.1} parent=1 // loop_exit
      _
    %485 = vsyncpa [#allocation3], 1
    %s486 = scalar_lea.sflag [#allocation3], 1
    %487 = vsyncpa %s486, 1

</llo_original>
